<compile_context>
chip_gen: v6e
topology: v6e:2x2x1
jax: 0.10.0
libtpu: 0.0.40
codegen_flags: <defaults>
</compile_context>

<pallas_src>
import jax
import jax.numpy as jnp
from jax import lax
from jax.experimental import pallas as pl
from jax.experimental.pallas import tpu as pltpu

_LANE = 128        # TPU lane width
_SUBLANE = 8       # TPU sublane width (f32)
TB_MAX = 512       # max gathered rows (output lane tile) per grid step
K_BLK_MAX = 512    # max vocab rows contracted per grid step


def _round_up(x, m):
    return (x + m - 1) // m * m


def _ui_embedding_kernel(ids_ref, table_t_ref, out_ref):
    # ids_ref    : VMEM (1, TB)         int32 — ids for this output tile
    # table_t_ref: VMEM (LD_pad, K_blk) f32   — transposed table, K block `k`
    # out_ref    : VMEM (LD_pad, TB)    f32   — gathered rows, transposed
    k = pl.program_id(1)
    k_blk = table_t_ref.shape[1]
    tb = ids_ref.shape[1]

    @pl.when(k == 0)
    def _():
        out_ref[...] = jnp.zeros_like(out_ref)

    ids = ids_ref[...]                                             # (1, TB)
    iota = lax.broadcasted_iota(jnp.int32, (k_blk, tb), 0) + k * k_blk
    onehot_t = (iota == ids).astype(table_t_ref.dtype)             # (K_blk, TB)

    # Each id falls in exactly one K block, so accumulation across the
    # "arbitrary" K axis is exact.  HIGHEST precision keeps the f32 gather
    # bit-exact on the MXU.
    out_ref[...] += jnp.dot(
        table_t_ref[...], onehot_t,
        preferred_element_type=jnp.float32,
        precision=lax.Precision.HIGHEST,
    )


def ui_embedding_forward(indices, table, *, tb_max=TB_MAX, k_blk_max=K_BLK_MAX):
    """indices: int array of any shape; table: [obj_num + 1, latent_dim] f32.

    Returns table[indices.reshape(-1)]  ==  embedding(input).view(-1, latent_dim).
    Negative ids produce zero rows (PyTorch nn.Embedding would raise).
    """
    num_emb, latent_dim = table.shape
    flat = indices.reshape(-1).astype(jnp.int32)
    n = flat.shape[0]

    # --- Tile sizes --------------------------------------------------------
    ld_pad = _round_up(latent_dim, _SUBLANE)            # sublane pad only, not 128
    k_blk = min(k_blk_max, _round_up(num_emb, _LANE))   # vocab rows per grid step
    k_pad = _round_up(num_emb, k_blk)

    # Output tile along N: as large as possible, but keep >= 2 grid steps so
    # the "parallel" axis can be sharded across v7x's two TensorCores.
    n_ceil = _round_up(max(n, 1), _LANE)
    if n_ceil >= 2 * _LANE:
        tb = min(tb_max, max(_LANE, (n_ceil // 2) // _LANE * _LANE))
    else:
        tb = _LANE
    n_pad = _round_up(max(n, 1), tb)

    # --- Padded operands ----------------------------------------------------
    # Zero-padded rows/cols of table^T; padded ids (= num_emb) either hit a
    # zero-padded column or match nothing -> zero output rows, sliced off.
    table_t = jnp.pad(
        table, ((0, k_pad - num_emb), (0, ld_pad - latent_dim))).T   # (ld_pad, k_pad)

    ids = flat
    if n_pad != n:
        ids = jnp.concatenate([flat, jnp.full((n_pad - n,), num_emb, jnp.int32)])
    ids = ids.reshape(1, n_pad)                # lane-dense index row

    n_tiles = n_pad // tb
    k_tiles = k_pad // k_blk
    grid = (n_tiles, k_tiles)

    table_bytes = ld_pad * k_pad * table.dtype.itemsize
    cost = pl.CostEstimate(
        # ~3 MXU passes for Precision.HIGHEST f32 emulation
        flops=3 * 2 * n_pad * k_pad * ld_pad,
        transcendentals=0,
        bytes_accessed=(
            n_pad * 4
            # table blocks are re-streamed per N tile only when K is blocked;
            # with a single (grid-invariant) K block it is DMA'd once.
            + table_bytes * (1 if k_tiles == 1 else n_tiles)
            + n_pad * ld_pad * 4),
    )

    out_t = pl.pallas_call(
        _ui_embedding_kernel,
        out_shape=jax.ShapeDtypeStruct((ld_pad, n_pad), table.dtype),
        grid_spec=pltpu.PrefetchScalarGridSpec(
            num_scalar_prefetch=0,
            grid=grid,
            in_specs=[
                # lane-dense index row, pipelined through VMEM
                pl.BlockSpec((1, tb), lambda i, k: (0, i)),
                # K-blocked transposed table, streamed from HBM
                pl.BlockSpec((ld_pad, k_blk), lambda i, k: (0, k)),
            ],
            out_specs=pl.BlockSpec((ld_pad, tb), lambda i, k: (0, i)),
        ),
        compiler_params=pltpu.CompilerParams(
            # N tiles are disjoint -> "parallel" (v7x 2-TC shard);
            # K is the resident-output reduction axis -> "arbitrary".
            dimension_semantics=("parallel", "arbitrary"),
            vmem_limit_bytes=32 * 1024 * 1024,
        ),
        cost_estimate=cost,
    )(ids, table_t)

    # Un-transpose + strip padding once in the wrapper.
    return out_t[:latent_dim, :n].T


def make_embedding_table(key, obj_num, latent_dim):
    # nn.Embedding(obj_num + 1, latent_dim) with xavier_normal_ init:
    # std = sqrt(2 / (num_embeddings + latent_dim))
    num_emb = obj_num + 1
    std = (2.0 / (num_emb + latent_dim)) ** 0.5
    return std * jax.random.normal(key, (num_emb, latent_dim), jnp.float32)


if __name__ == "__main__":
    key = jax.random.PRNGKey(0)
    k_tab, k_idx = jax.random.split(key)

    obj_num = 50
    latent_dim = 32
    batch, seq = 16, 32      # 512 ids -> grid = (2 parallel N tiles, 1 K tile)

    table = make_embedding_table(k_tab, obj_num, latent_dim)
    indices = jax.random.randint(k_idx, (batch, seq), 0, obj_num + 1, jnp.int32)

    out = ui_embedding_forward(indices, table)
    out = jax.block_until_ready(out)

    # reference check (pure JAX gather == embedding(input).view(-1, latent_dim))
    ref = table[indices.reshape(-1)]
    assert out.shape == (batch * seq, latent_dim)
    assert jnp.allclose(out, ref, atol=1e-6), "mismatch vs reference gather"

    print("KERNEL_OK")
</pallas_src>

<mosaic_0001>
module attributes {stable_mosaic.version = 11 : i64} {
  func.func @_ui_embedding_kernel(%arg0: i32, %arg1: i32, %arg2: memref<1x256xi32, #tpu.memory_space<vmem>>, %arg3: memref<32x128xf32, #tpu.memory_space<vmem>>, %arg4: memref<32x256xf32, #tpu.memory_space<vmem>>) attributes {dimension_semantics = [#tpu.dimension_semantics<parallel>, #tpu.dimension_semantics<arbitrary>], iteration_bounds = array<i64: 2, 1>, scalar_prefetch = 0 : i64, scratch_operands = 0 : i64, tpu.core_type = #tpu.core_type<tc>, window_params = [{transform_indices = @transform_0, window_bounds = array<i64: 1, 256>}, {transform_indices = @transform_1, window_bounds = array<i64: 32, 128>}, {transform_indices = @transform_2, window_bounds = array<i64: 32, 256>}]} {
    %c0_i32 = arith.constant 0 : i32
    %0 = arith.cmpi eq, %arg1, %c0_i32 : i32
    %1 = arith.extui %0 : i1 to i32
    %c0_i32_0 = arith.constant 0 : i32
    %2 = arith.cmpi ne, %1, %c0_i32_0 : i32
    scf.if %2 {
      %cst_8 = arith.constant 0.000000e+00 : f32
      %17 = vector.broadcast %cst_8 : f32 to vector<32x256xf32>
      %c0_9 = arith.constant 0 : index
      %c0_10 = arith.constant 0 : index
      %18 = vector.load %arg4[%c0_9, %c0_10] : memref<32x256xf32, #tpu.memory_space<vmem>>, vector<32x256xf32>
      tpu.vector_store %arg4[%c0_9, %c0_10], %17 {strides = array<i32>} : memref<32x256xf32, #tpu.memory_space<vmem>>, vector<32x256xf32>,
    } else {
    }
    %c0 = arith.constant 0 : index
    %c0_1 = arith.constant 0 : index
    %3 = vector.load %arg2[%c0, %c0_1] : memref<1x256xi32, #tpu.memory_space<vmem>>, vector<1x256xi32>
    %4 = tpu.iota {dimensions = array<i32: 0>} : vector<128x256xi32>
    %c128_i32 = arith.constant 128 : i32
    %5 = arith.muli %arg1, %c128_i32 : i32
    %6 = vector.broadcast %5 : i32 to vector<128x256xi32>
    %7 = arith.addi %4, %6 : vector<128x256xi32>
    %8 = vector.broadcast %3 : vector<1x256xi32> to vector<128x256xi32>
    %9 = arith.cmpi eq, %7, %8 : vector<128x256xi32>
    %10 = arith.extui %9 : vector<128x256xi1> to vector<128x256xi32>
    %11 = arith.sitofp %10 : vector<128x256xi32> to vector<128x256xf32>
    %c0_2 = arith.constant 0 : index
    %c0_3 = arith.constant 0 : index
    %12 = vector.load %arg4[%c0_2, %c0_3] : memref<32x256xf32, #tpu.memory_space<vmem>>, vector<32x256xf32>
    %c0_4 = arith.constant 0 : index
    %c0_5 = arith.constant 0 : index
    %13 = vector.load %arg3[%c0_4, %c0_5] : memref<32x128xf32, #tpu.memory_space<vmem>>, vector<32x128xf32>
    %cst = arith.constant dense<0.000000e+00> : vector<32x256xf32>
    %14 = tpu.matmul %13, %11, %cst {dimension_numbers = #tpu.dot_dimension_numbers<[1], [0], [0], [1], [0, 0, 1, 1], [], []>, precision = #tpu.contract_precision<fp32>} : vector<32x128xf32>, vector<128x256xf32>, vector<32x256xf32> -> vector<32x256xf32>
    %15 = arith.addf %12, %14 : vector<32x256xf32>
    %c0_6 = arith.constant 0 : index
    %c0_7 = arith.constant 0 : index
    %16 = vector.load %arg4[%c0_6, %c0_7] : memref<32x256xf32, #tpu.memory_space<vmem>>, vector<32x256xf32>
    tpu.vector_store %arg4[%c0_6, %c0_7], %15 {strides = array<i32>} : memref<32x256xf32, #tpu.memory_space<vmem>>, vector<32x256xf32>,
    return
  }
  func.func @transform_0(%arg0: i32, %arg1: i32) -> (i32, i32) {
    %c0_i32 = arith.constant 0 : i32
    %c0_i32_0 = arith.constant 0 : i32
    return %c0_i32, %arg0 : i32, i32
  }
  func.func @transform_1(%arg0: i32, %arg1: i32) -> (i32, i32) {
    %c0_i32 = arith.constant 0 : i32
    %c0_i32_0 = arith.constant 0 : i32
    return %c0_i32, %arg1 : i32, i32
  }
  func.func @transform_2(%arg0: i32, %arg1: i32) -> (i32, i32) {
    %c0_i32 = arith.constant 0 : i32
    %c0_i32_0 = arith.constant 0 : i32
    return %c0_i32, %arg0 : i32, i32
  }
}

</mosaic_0001>

<llo_original>
// kernel: tpu_custom_call.1
$region0: #{tpu_custom_call.1}
  #allocation0 [shape = 'u32[]', space=smem, size = 0x4, offset = 0x4, fixed_abs, tag = 'smem constant byte address 0x4 - core index']
  #allocation1 [shape = 'u32[144,128]{1,0:T(1,128)}', space=vmem, size = 0x12000, scoped, tag = 'internal scratch']
  %s0 = inlined_call_operand.hbm [shape: s32[1,512], index: 0, kind: input, shape index: {}]
  %s1 = inlined_call_operand.hbm [shape: f32[32,128], index: 1, kind: input, shape index: {}]
  %s2 = inlined_call_operand.hbm [shape: f32[32,512], index: 2, kind: output, shape index: {}]
  %s3 = sld [smem:[#allocation0]]
  $region53: #{tpu_custom_call.1} parent=0
    _
  %s5 = ssub.s32 1, %s3
  %s6 = scalar_select 0, %s5, %s3
  $region1: #{tpu_custom_call.1} parent=0
    #allocation2 [shape = 'u8[2048]{0}', space=vmem, size = 0x800, scoped, tag = 'input window, operand 0']
    #allocation3 [shape = 's32[2]{0}', space=sflag, size = 0x8, scoped, tag = 'scoped memory for tpu_custom_call.1']
    #allocation4 [shape = 's32[2]{0}', space=sflag, size = 0x8, scoped, tag = 'scoped memory for tpu_custom_call.1']
    #allocation5 [shape = 'u8[16384]{0}', space=vmem, size = 0x4000, scoped, tag = 'input window, operand 1, single buffered']
    #allocation6 [shape = 's32[1]{0}', space=sflag, size = 0x4, scoped, tag = 'scoped memory for tpu_custom_call.1']
    #allocation7 [shape = 'u8[65536]{0}', space=vmem, size = 0x10000, scoped, tag = 'output window, operand 0']
    %7 = vsyncpa [#allocation3], 0
    %s8 = scalar_lea.sflag [#allocation3], 1
    %9 = vsyncpa %s8, 0
    %10 = vsyncpa [#allocation6], 0
    %11 = vsyncpa [#allocation4], 0
    %s12 = scalar_lea.sflag [#allocation4], 1
    %13 = vsyncpa %s12, 0
    loop: start=0, step=1, limit=4
    $region2: #{tpu_custom_call.1} parent=1 // loop_pre_header
      _
    $region3: #{tpu_custom_call.1} parent=1 // loop_header
      %s15 = sphi 0, %s19
      %p16 = scmp.ge.s32.totalorder %s15, 4
      %s22 = sphi 0, %s34
      %s23 = sphi 0, %s30
      %s24 = sphi 0, %s22
      %s25 = sphi 0, %s23
      %s26 = sphi 0, %s24
      %s27 = sphi 0, %s25
      %s37 = sphi 0, %s39
      %s40 = sphi 0, %s37
      %s41 = sphi 0, %s40
      %s57 = sphi 0, %s41
      %s63 = sphi 0, %s65
      %s66 = sphi 0, %s63
      %s67 = sphi 0, %s66
      %s83 = sphi 0, %s67
      %s89 = sphi 0, %s91
      %s92 = sphi 0, %s89
      %s93 = sphi 0, %s92
      %s109 = sphi 0, %s93
    $region4: #{tpu_custom_call.1} parent=1 // loop_header_branch
      %18 = sbr.rel (%p16) target = $region8
    $region5: #{tpu_custom_call.1} parent=1 // loop_body
      %s20 = ssub.s32 %s15, 1
      %s21 = ssub.s32 %s15, 2
      %s28 = sadd.s32 1, %s23
      %p29 = scmp.ge.s32.totalorder %s28, 1
      %s30 = scalar_select %p29, 0, %s28
      %s31 = sadd.s32 1, %s22
      %s32 = scalar_select %p29, %s31, %s22
      %p33 = scmp.ge.s32.totalorder %s32, 2
      %s34 = scalar_select %p33, 0, %s32
      %s35 = ssub.s32 %s22, %s34
      %p36 = scmp.eq.s32.totalorder %s35, 0
      %s38 = sadd.s32 %s37, 1
      %s39 = scalar_select %p36, %s37, %s38
      %p42 = pneg %p36
      %p43 = scmp.eq.s32.totalorder %s15, 1
      %p44 = por %p42, %p43
      %p45 = scmp.ne.s32.totalorder %s37, %s40
      %p46 = scmp.eq.s32.totalorder %s15, 0
      %p47 = por %p45, %p46
      %p48 = scmp.ne.s32.totalorder %s37, %s40
      %p49 = scmp.eq.s32.totalorder %s20, 1
      %p50 = por %p48, %p49
      %p51 = scmp.ne.s32.totalorder %s40, %s41
      %p52 = scmp.eq.s32.totalorder %s20, 0
      %p53 = por %p51, %p52
      %p54 = scmp.ne.s32.totalorder %s40, %s41
      %p55 = scmp.eq.s32.totalorder %s21, 1
      %p56 = por %p54, %p55
      %p58 = scmp.ne.s32.totalorder %s41, %s57
      %p59 = scmp.eq.s32.totalorder %s21, 0
      %p60 = por %p58, %p59
      %s61 = ssub.s32 %s23, %s30
      %p62 = scmp.eq.s32.totalorder %s61, 0
      %s64 = sadd.s32 %s63, 1
      %s65 = scalar_select %p62, %s63, %s64
      %p68 = pneg %p62
      %p69 = scmp.eq.s32.totalorder %s15, 1
      %p70 = por %p68, %p69
      %p71 = scmp.ne.s32.totalorder %s63, %s66
      %p72 = scmp.eq.s32.totalorder %s15, 0
      %p73 = por %p71, %p72
      %p74 = scmp.ne.s32.totalorder %s63, %s66
      %p75 = scmp.eq.s32.totalorder %s20, 1
      %p76 = por %p74, %p75
      %p77 = scmp.ne.s32.totalorder %s66, %s67
      %p78 = scmp.eq.s32.totalorder %s20, 0
      %p79 = por %p77, %p78
      %p80 = scmp.ne.s32.totalorder %s66, %s67
      %p81 = scmp.eq.s32.totalorder %s21, 1
      %p82 = por %p80, %p81
      %p84 = scmp.ne.s32.totalorder %s67, %s83
      %p85 = scmp.eq.s32.totalorder %s21, 0
      %p86 = por %p84, %p85
      %s87 = ssub.s32 %s22, %s34
      %p88 = scmp.eq.s32.totalorder %s87, 0
      %s90 = sadd.s32 %s89, 1
      %s91 = scalar_select %p88, %s89, %s90
      %p94 = pneg %p88
      %p95 = scmp.eq.s32.totalorder %s15, 1
      %p96 = por %p94, %p95
      %p97 = scmp.ne.s32.totalorder %s89, %s92
      %p98 = scmp.eq.s32.totalorder %s15, 0
      %p99 = por %p97, %p98
      %p100 = scmp.ne.s32.totalorder %s89, %s92
      %p101 = scmp.eq.s32.totalorder %s20, 1
      %p102 = por %p100, %p101
      %p103 = scmp.ne.s32.totalorder %s92, %s93
      %p104 = scmp.eq.s32.totalorder %s20, 0
      %p105 = por %p103, %p104
      %p106 = scmp.ne.s32.totalorder %s92, %s93
      %p107 = scmp.eq.s32.totalorder %s21, 1
      %p108 = por %p106, %p107
      %p110 = scmp.ne.s32.totalorder %s93, %s109
      %p111 = scmp.eq.s32.totalorder %s21, 0
      %p112 = por %p110, %p111
      %p113 = scmp.le.s32.totalorder 1, %s15
      %p114 = scmp.lt.s32.totalorder %s15, 3
      %p115 = pnand %p113, %p114
      %p116 = pneg %p115
      // Predicated region
      $region9: #{tpu_custom_call.1} parent=5 // pred_check
        _
      $region10: #{tpu_custom_call.1} parent=5 // pred_check_branch
        %118 = sbr.rel (%p115) target = $region12
      $region11: #{tpu_custom_call.1} parent=5 // pred_region
        %s119 = ssub.s32 %s15, 1
        // Predicated region
        $region13: #{tpu_custom_call.1} parent=11 // pred_check
          %p120 = pneg %p79
        $region14: #{tpu_custom_call.1} parent=11 // pred_check_branch
          %122 = sbr.rel (%p120) target = $region16
        $region15: #{tpu_custom_call.1} parent=11 // pred_region
          %s124 = ssub.s32 512, 512
          %125 = vsyncadd [#allocation6], %s124
          %s126 = smul.addr %s25, 128
          %s127 = scalar_lea.hbm %s1, %s126
          %s128 = sshll.u32 [#allocation5], 4
          %s129 = int_to_ptr.vmem [resolvable:$true] %s128
          %134 = dma.hbm_to_vmem [thread:$0]  %s127, 512, %s129, [#allocation6], 128, 128, 8
        $region16: #{tpu_custom_call.1} parent=11 // pred_fallthru
          _
      $region12: #{tpu_custom_call.1} parent=5 // pred_fallthru
        _
      %p135 = scmp.lt.s32.totalorder %s15, 2
      // Predicated region
      $region17: #{tpu_custom_call.1} parent=5 // pred_check
        %p136 = pneg %p135
      $region18: #{tpu_custom_call.1} parent=5 // pred_check_branch
        %138 = sbr.rel (%p136) target = $region20
      $region19: #{tpu_custom_call.1} parent=5 // pred_region
        // Predicated region
        $region21: #{tpu_custom_call.1} parent=19 // pred_check
          %p139 = pneg %p47
        $region22: #{tpu_custom_call.1} parent=19 // pred_check_branch
          %141 = sbr.rel (%p139) target = $region24
        $region23: #{tpu_custom_call.1} parent=19 // pred_region
          %s142 = sand.u32 %s37, 1
          %s143 = scalar_lea.sflag [#allocation3], %s142
          %s144 = sand.u32 %s37, 1
          %s145 = smul.addr %s144, 2
          %s146 = scalar_lea.vmem [#allocation2], %s145
          %s147 = smul.u32 2, %s22
          %s149 = ssub.s32 32, 32
          %150 = vsyncadd %s143, %s149
          %s151 = smul.addr %s147, 16
          %s152 = scalar_lea.hbm %s0, %s151
          %s154 = sshll.u32 %s146, 4
          %s155 = int_to_ptr.vmem [resolvable:$true] %s154
          %157 = dma.hbm_to_vmem [thread:$0]  %s152, 32, %s155, %s143
        $region24: #{tpu_custom_call.1} parent=19 // pred_fallthru
          _
      $region20: #{tpu_custom_call.1} parent=5 // pred_fallthru
        _
      %p158 = scmp.le.s32.totalorder 1, %s15
      %p159 = scmp.lt.s32.totalorder %s15, 3
      %p160 = pnand %p158, %p159
      %p161 = pneg %p160
      // Predicated region
      $region25: #{tpu_custom_call.1} parent=5 // pred_check
        _
      $region26: #{tpu_custom_call.1} parent=5 // pred_check_branch
        %163 = sbr.rel (%p160) target = $region28
      $region27: #{tpu_custom_call.1} parent=5 // pred_region
        %s164 = ssub.s32 %s15, 1
        %s165 = sand.u32 %s40, 1
        %s166 = scalar_lea.sflag [#allocation3], %s165
        %s167 = sand.u32 %s40, 1
        %s168 = smul.addr %s167, 2
        %s169 = scalar_lea.vmem [#allocation2], %s168
        // Predicated region
        $region29: #{tpu_custom_call.1} parent=27 // pred_check
          %p170 = pneg %p53
        $region30: #{tpu_custom_call.1} parent=27 // pred_check_branch
          %172 = sbr.rel (%p170) target = $region32
        $region31: #{tpu_custom_call.1} parent=27 // pred_region
          %173 = dma.done %s166, 32
        $region32: #{tpu_custom_call.1} parent=27 // pred_fallthru
          _
        // Predicated region
        $region33: #{tpu_custom_call.1} parent=27 // pred_check
          %p174 = pneg %p79
        $region34: #{tpu_custom_call.1} parent=27 // pred_check_branch
          %176 = sbr.rel (%p174) target = $region36
        $region35: #{tpu_custom_call.1} parent=27 // pred_region
          %177 = dma.done [#allocation6], 512
        $region36: #{tpu_custom_call.1} parent=27 // pred_fallthru
          _
        %s178 = sand.u32 %s40, 1
        %s179 = scalar_lea.sflag [#allocation3], %s178
        %s180 = sand.u32 %s40, 1
        %s181 = smul.addr %s180, 2
        %s182 = scalar_lea.vmem [#allocation2], %s181
        %p183 = pneg %p53
        %p184 = pneg %p50
        %p185 = pneg %p79
        %p186 = pneg %p76
        %p187 = pneg %p105
        %p188 = pneg %p102
        %s189 = sand.u32 %s92, 1
        %s190 = scalar_lea.sflag [#allocation4], %s189
        %s191 = sand.u32 %s92, 1
        %s192 = smul.addr %s191, 64
        %s193 = scalar_lea.vmem [#allocation7], %s192
        %s194 = smul.u32 2, %s24
        %s195 = smul.u32 2, %s24
        %p196 = scmp.eq.s32.totalorder %s25, 0
        // Predicated region
        $region37: #{tpu_custom_call.1} parent=27 // pred_check
          %p197 = pneg %p196
        $region38: #{tpu_custom_call.1} parent=27 // pred_check_branch
          %199 = sbr.rel (%p197) target = $region40
        $region39: #{tpu_custom_call.1} parent=27 // pred_region
          %200 = vst [vmem:[%s193] sm:$0xff] 0.0
          %201 = vst [vmem:[%s193 + $0x8] sm:$0xff] 0.0
          %202 = vst [vmem:[%s193 + $0x10] sm:$0xff] 0.0
          %203 = vst [vmem:[%s193 + $0x18] sm:$0xff] 0.0
          %204 = vst [vmem:[%s193 + $0x20] sm:$0xff] 0.0
          %205 = vst [vmem:[%s193 + $0x28] sm:$0xff] 0.0
          %206 = vst [vmem:[%s193 + $0x30] sm:$0xff] 0.0
          %207 = vst [vmem:[%s193 + $0x38] sm:$0xff] 0.0
        $region40: #{tpu_custom_call.1} parent=27 // pred_fallthru
          _
        %v208 = vld [vmem:[%s169] sm:$0x3]
        %v209 = vlaneseq
        %v210 = vshrl.u32 %v209, 7
        %v211 = vadd.s32 %v210, 8
        %v212 = vadd.s32 %v210, 16
        %v213 = vadd.s32 %v210, 24
        %v214 = vadd.s32 %v210, 32
        %v215 = vadd.s32 %v210, 40
        %v216 = vadd.s32 %v210, 48
        %v217 = vadd.s32 %v210, 56
        %v218 = vadd.s32 %v210, 64
        %v219 = vadd.s32 %v210, 72
        %v220 = vadd.s32 %v210, 80
        %v221 = vadd.s32 %v210, 88
        %v222 = vadd.s32 %v210, 96
        %v223 = vadd.s32 %v210, 104
        %v224 = vadd.s32 %v210, 112
        %v225 = vadd.s32 %v210, 120
        %s226 = smul.u32 %s25, 128
        %v227 = vstv %s226
        %v228 = vadd.s32 %v210, %v227
        %v229 = vadd.s32 %v211, %v227
        %v230 = vadd.s32 %v212, %v227
        %v231 = vadd.s32 %v213, %v227
        %v232 = vadd.s32 %v214, %v227
        %v233 = vadd.s32 %v215, %v227
        %v234 = vadd.s32 %v216, %v227
        %v235 = vadd.s32 %v217, %v227
        %v236 = vadd.s32 %v218, %v227
        %v237 = vadd.s32 %v219, %v227
        %v238 = vadd.s32 %v220, %v227
        %v239 = vadd.s32 %v221, %v227
        %v240 = vadd.s32 %v222, %v227
        %v241 = vadd.s32 %v223, %v227
        %v242 = vadd.s32 %v224, %v227
        %v243 = vadd.s32 %v225, %v227
        %v244 = vlaneseq
        %v245 = vshrl.u32 %v244, 7
        %v246 = vsub.s32 0, %v245
        %v247 = vrot.slane %v208, %v246
        %v248 = vlaneseq
        %v249 = vshrl.u32 %v248, 7
        %v250 = vsub.s32 1, %v249
        %v251 = vrot.slane %v208, %v250
        %vm252 = vcmp.eq.s32.totalorder %v228, %v247
        %vm253 = vcmp.eq.s32.totalorder %v228, %v251
        %vm254 = vcmp.eq.s32.totalorder %v229, %v247
        %vm255 = vcmp.eq.s32.totalorder %v229, %v251
        %vm256 = vcmp.eq.s32.totalorder %v230, %v247
        %vm257 = vcmp.eq.s32.totalorder %v230, %v251
        %vm258 = vcmp.eq.s32.totalorder %v231, %v247
        %vm259 = vcmp.eq.s32.totalorder %v231, %v251
        %vm260 = vcmp.eq.s32.totalorder %v232, %v247
        %vm261 = vcmp.eq.s32.totalorder %v232, %v251
        %vm262 = vcmp.eq.s32.totalorder %v233, %v247
        %vm263 = vcmp.eq.s32.totalorder %v233, %v251
        %vm264 = vcmp.eq.s32.totalorder %v234, %v247
        %vm265 = vcmp.eq.s32.totalorder %v234, %v251
        %vm266 = vcmp.eq.s32.totalorder %v235, %v247
        %vm267 = vcmp.eq.s32.totalorder %v235, %v251
        %vm268 = vcmp.eq.s32.totalorder %v236, %v247
        %vm269 = vcmp.eq.s32.totalorder %v236, %v251
        %vm270 = vcmp.eq.s32.totalorder %v237, %v247
        %vm271 = vcmp.eq.s32.totalorder %v237, %v251
        %vm272 = vcmp.eq.s32.totalorder %v238, %v247
        %vm273 = vcmp.eq.s32.totalorder %v238, %v251
        %vm274 = vcmp.eq.s32.totalorder %v239, %v247
        %vm275 = vcmp.eq.s32.totalorder %v239, %v251
        %vm276 = vcmp.eq.s32.totalorder %v240, %v247
        %vm277 = vcmp.eq.s32.totalorder %v240, %v251
        %vm278 = vcmp.eq.s32.totalorder %v241, %v247
        %vm279 = vcmp.eq.s32.totalorder %v241, %v251
        %vm280 = vcmp.eq.s32.totalorder %v242, %v247
        %vm281 = vcmp.eq.s32.totalorder %v242, %v251
        %vm282 = vcmp.eq.s32.totalorder %v243, %v247
        %vm283 = vcmp.eq.s32.totalorder %v243, %v251
        %v284 = vsel %vm252, 1, 0
        %v285 = vsel %vm253, 1, 0
        %v286 = vsel %vm254, 1, 0
        %v287 = vsel %vm255, 1, 0
        %v288 = vsel %vm256, 1, 0
        %v289 = vsel %vm257, 1, 0
        %v290 = vsel %vm258, 1, 0
        %v291 = vsel %vm259, 1, 0
        %v292 = vsel %vm260, 1, 0
        %v293 = vsel %vm261, 1, 0
        %v294 = vsel %vm262, 1, 0
        %v295 = vsel %vm263, 1, 0
        %v296 = vsel %vm264, 1, 0
        %v297 = vsel %vm265, 1, 0
        %v298 = vsel %vm266, 1, 0
        %v299 = vsel %vm267, 1, 0
        %v300 = vsel %vm268, 1, 0
        %v301 = vsel %vm269, 1, 0
        %v302 = vsel %vm270, 1, 0
        %v303 = vsel %vm271, 1, 0
        %v304 = vsel %vm272, 1, 0
        %v305 = vsel %vm273, 1, 0
        %v306 = vsel %vm274, 1, 0
        %v307 = vsel %vm275, 1, 0
        %v308 = vsel %vm276, 1, 0
        %v309 = vsel %vm277, 1, 0
        %v310 = vsel %vm278, 1, 0
        %v311 = vsel %vm279, 1, 0
        %v312 = vsel %vm280, 1, 0
        %v313 = vsel %vm281, 1, 0
        %v314 = vsel %vm282, 1, 0
        %v315 = vsel %vm283, 1, 0
        %v316 = vcvt.s32.f32 %v284
        %v317 = vcvt.s32.f32 %v285
        %v318 = vcvt.s32.f32 %v286
        %v319 = vcvt.s32.f32 %v287
        %v320 = vcvt.s32.f32 %v288
        %v321 = vcvt.s32.f32 %v289
        %v322 = vcvt.s32.f32 %v290
        %v323 = vcvt.s32.f32 %v291
        %v324 = vcvt.s32.f32 %v292
        %v325 = vcvt.s32.f32 %v293
        %v326 = vcvt.s32.f32 %v294
        %v327 = vcvt.s32.f32 %v295
        %v328 = vcvt.s32.f32 %v296
        %v329 = vcvt.s32.f32 %v297
        %v330 = vcvt.s32.f32 %v298
        %v331 = vcvt.s32.f32 %v299
        %v332 = vcvt.s32.f32 %v300
        %v333 = vcvt.s32.f32 %v301
        %v334 = vcvt.s32.f32 %v302
        %v335 = vcvt.s32.f32 %v303
        %v336 = vcvt.s32.f32 %v304
        %v337 = vcvt.s32.f32 %v305
        %v338 = vcvt.s32.f32 %v306
        %v339 = vcvt.s32.f32 %v307
        %v340 = vcvt.s32.f32 %v308
        %v341 = vcvt.s32.f32 %v309
        %v342 = vcvt.s32.f32 %v310
        %v343 = vcvt.s32.f32 %v311
        %v344 = vcvt.s32.f32 %v312
        %v345 = vcvt.s32.f32 %v313
        %v346 = vcvt.s32.f32 %v314
        %v347 = vcvt.s32.f32 %v315
        %v348 = vld [vmem:[%s193] sm:$0xff]
        %v349 = vld [vmem:[%s193 + $0x8] sm:$0xff]
        %v350 = vld [vmem:[%s193 + $0x10] sm:$0xff]
        %v351 = vld [vmem:[%s193 + $0x18] sm:$0xff]
        %v352 = vld [vmem:[%s193 + $0x20] sm:$0xff]
        %v353 = vld [vmem:[%s193 + $0x28] sm:$0xff]
        %v354 = vld [vmem:[%s193 + $0x30] sm:$0xff]
        %v355 = vld [vmem:[%s193 + $0x38] sm:$0xff]
        %v356 = vld [vmem:[#allocation5] sm:$0xff]
        %v357 = vld [vmem:[#allocation5 + $0x8] sm:$0xff]
        %v358 = vld [vmem:[#allocation5 + $0x10] sm:$0xff]
        %v359 = vld [vmem:[#allocation5 + $0x18] sm:$0xff]
        %v360 = vand.u32 %v347, 4294901760
        %361 = vmatprep.subr.mxu0 %v360
        %v362 = vand.u32 %v346, 4294901760
        %363 = vmatpush1.msra.mxu0 %v362
        %v364 = vand.u32 %v345, 4294901760
        %365 = vmatprep.subr.mxu0 %v364
        %v366 = vand.u32 %v344, 4294901760
        %367 = vmatpush1.msra.mxu0 %v366
        %v368 = vand.u32 %v343, 4294901760
        %369 = vmatprep.subr.mxu0 %v368
        %v370 = vand.u32 %v342, 4294901760
        %371 = vmatpush1.msra.mxu0 %v370
        %v372 = vand.u32 %v341, 4294901760
        %373 = vmatprep.subr.mxu0 %v372
        %v374 = vand.u32 %v340, 4294901760
        %375 = vmatpush1.msra.mxu0 %v374
        %v376 = vand.u32 %v339, 4294901760
        %377 = vmatprep.subr.mxu0 %v376
        %v378 = vand.u32 %v338, 4294901760
        %379 = vmatpush1.msra.mxu0 %v378
        %v380 = vand.u32 %v337, 4294901760
        %381 = vmatprep.subr.mxu0 %v380
        %v382 = vand.u32 %v336, 4294901760
        %383 = vmatpush1.msra.mxu0 %v382
        %v384 = vand.u32 %v335, 4294901760
        %385 = vmatprep.subr.mxu0 %v384
        %v386 = vand.u32 %v334, 4294901760
        %387 = vmatpush1.msra.mxu0 %v386
        %v388 = vand.u32 %v333, 4294901760
        %389 = vmatprep.subr.mxu0 %v388
        %v390 = vand.u32 %v332, 4294901760
        %391 = vmatpush1.msra.mxu0 %v390
        %v392 = vand.u32 %v331, 4294901760
        %393 = vmatprep.subr.mxu0 %v392
        %v394 = vand.u32 %v330, 4294901760
        %395 = vmatpush1.msra.mxu0 %v394
        %v396 = vand.u32 %v329, 4294901760
        %397 = vmatprep.subr.mxu0 %v396
        %v398 = vand.u32 %v328, 4294901760
        %399 = vmatpush1.msra.mxu0 %v398
        %v400 = vand.u32 %v327, 4294901760
        %401 = vmatprep.subr.mxu0 %v400
        %v402 = vand.u32 %v326, 4294901760
        %403 = vmatpush1.msra.mxu0 %v402
        %v404 = vand.u32 %v325, 4294901760
        %405 = vmatprep.subr.mxu0 %v404
        %v406 = vand.u32 %v324, 4294901760
        %407 = vmatpush1.msra.mxu0 %v406
        %v408 = vand.u32 %v323, 4294901760
        %409 = vmatprep.subr.mxu0 %v408
        %v410 = vand.u32 %v322, 4294901760
        %411 = vmatpush1.msra.mxu0 %v410
        %v412 = vand.u32 %v321, 4294901760
        %413 = vmatprep.subr.mxu0 %v412
        %v414 = vand.u32 %v320, 4294901760
        %415 = vmatpush1.msra.mxu0 %v414
        %v416 = vand.u32 %v319, 4294901760
        %417 = vmatprep.subr.mxu0 %v416
        %v418 = vand.u32 %v318, 4294901760
        %419 = vmatpush1.msra.mxu0 %v418
        %v420 = vand.u32 %v317, 4294901760
        %421 = vmatprep.subr.mxu0 %v420
        %v422 = vand.u32 %v316, 4294901760
        %423 = vmatpush1.msra.mxu0 %v422
        %424 = vmatprep.subr.mxu0 0.0
        %425 = vmatpush2.msra.mxu0 0.0
        %426 = vmatprep.subr.mxu0 0.0
        %427 = vmatpush2.msra.mxu0 0.0
        %428 = vmatprep.subr.mxu0 0.0
        %429 = vmatpush2.msra.mxu0 0.0
        %430 = vmatprep.subr.mxu0 0.0
        %431 = vmatpush2.msra.mxu0 0.0
        %432 = vmatprep.subr.mxu0 0.0
        %433 = vmatpush2.msra.mxu0 0.0
        %434 = vmatprep.subr.mxu0 0.0
        %435 = vmatpush2.msra.mxu0 0.0
        %436 = vmatprep.subr.mxu0 0.0
        %437 = vmatpush2.msra.mxu0 0.0
        %438 = vmatprep.subr.mxu0 0.0
        %439 = vmatpush2.msra.mxu0 0.0
        %440 = vmatprep.subr.mxu0 0.0
        %441 = vmatpush2.msra.mxu0 0.0
        %442 = vmatprep.subr.mxu0 0.0
        %443 = vmatpush2.msra.mxu0 0.0
        %444 = vmatprep.subr.mxu0 0.0
        %445 = vmatpush2.msra.mxu0 0.0
        %446 = vmatprep.subr.mxu0 0.0
        %447 = vmatpush2.msra.mxu0 0.0
        %448 = vmatprep.subr.mxu0 0.0
        %449 = vmatpush2.msra.mxu0 0.0
        %450 = vmatprep.subr.mxu0 0.0
        %451 = vmatpush2.msra.mxu0 0.0
        %452 = vmatprep.subr.mxu0 0.0
        %453 = vmatpush2.msra.mxu0 0.0
        %454 = vmatprep.subr.mxu0 0.0
        %455 = vmatpush2.msra.mxu0 0.0
        %456 = vmatprep.mubr.f32.mxu0 0.0
        %v457 = vand.u32 %v356, 4294901760
        %v458 = vsub.f32 %v356, %v457
        %v459 = vand.u32 %v458, 4294901760
        %v460 = vsub.f32 %v458, %v459
        %v461 = vand.u32 %v460, 4294901760
        %462 = vmatmul.mubr.f32.gmra.mxu0 %v461
        %v463 = vpop.f32.mrf.mxu0
        %v464 = vadd.f32 0.0, %v463
        %v465 = vpop.f32.mrf.mxu0
        %v466 = vadd.f32 0.0, %v465
        %467 = vmatprep.mubr.f32.mxu0 0.0
        %v468 = vand.u32 %v357, 4294901760
        %v469 = vsub.f32 %v357, %v468
        %v470 = vand.u32 %v469, 4294901760
        %v471 = vsub.f32 %v469, %v470
        %v472 = vand.u32 %v471, 4294901760
        %473 = vmatmul.mubr.f32.gmra.mxu0 %v472
        %v474 = vpop.f32.mrf.mxu0
        %v475 = vadd.f32 0.0, %v474
        %v476 = vpop.f32.mrf.mxu0
        %v477 = vadd.f32 0.0, %v476
        %478 = vmatprep.mubr.f32.mxu0 0.0
        %v479 = vand.u32 %v358, 4294901760
        %v480 = vsub.f32 %v358, %v479
        %v481 = vand.u32 %v480, 4294901760
        %v482 = vsub.f32 %v480, %v481
        %v483 = vand.u32 %v482, 4294901760
        %484 = vmatmul.mubr.f32.gmra.mxu0 %v483
        %v485 = vpop.f32.mrf.mxu0
        %v486 = vadd.f32 0.0, %v485
        %v487 = vpop.f32.mrf.mxu0
        %v488 = vadd.f32 0.0, %v487
        %489 = vmatprep.mubr.f32.mxu0 0.0
        %v490 = vand.u32 %v359, 4294901760
        %v491 = vsub.f32 %v359, %v490
        %v492 = vand.u32 %v491, 4294901760
        %v493 = vsub.f32 %v491, %v492
        %v494 = vand.u32 %v493, 4294901760
        %495 = vmatmul.mubr.f32.gmra.mxu0 %v494
        %v496 = vpop.f32.mrf.mxu0
        %v497 = vadd.f32 0.0, %v496
        %v498 = vpop.f32.mrf.mxu0
        %v499 = vadd.f32 0.0, %v498
        %500 = vdwg.mxu0
        %v501 = vand.u32 %v347, 4294901760
        %v502 = vsub.f32 %v347, %v501
        %v503 = vand.u32 %v502, 4294901760
        %v504 = vsub.f32 %v502, %v503
        %v505 = vand.u32 %v504, 4294901760
        %506 = vmatprep.subr.mxu0 %v505
        %v507 = vand.u32 %v346, 4294901760
        %v508 = vsub.f32 %v346, %v507
        %v509 = vand.u32 %v508, 4294901760
        %v510 = vsub.f32 %v508, %v509
        %v511 = vand.u32 %v510, 4294901760
        %512 = vmatpush1.msra.mxu0 %v511
        %v513 = vand.u32 %v345, 4294901760
        %v514 = vsub.f32 %v345, %v513
        %v515 = vand.u32 %v514, 4294901760
        %v516 = vsub.f32 %v514, %v515
        %v517 = vand.u32 %v516, 4294901760
        %518 = vmatprep.subr.mxu0 %v517
        %v519 = vand.u32 %v344, 4294901760
        %v520 = vsub.f32 %v344, %v519
        %v521 = vand.u32 %v520, 4294901760
        %v522 = vsub.f32 %v520, %v521
        %v523 = vand.u32 %v522, 4294901760
        %524 = vmatpush1.msra.mxu0 %v523
        %v525 = vand.u32 %v343, 4294901760
        %v526 = vsub.f32 %v343, %v525
        %v527 = vand.u32 %v526, 4294901760
        %v528 = vsub.f32 %v526, %v527
        %v529 = vand.u32 %v528, 4294901760
        %530 = vmatprep.subr.mxu0 %v529
        %v531 = vand.u32 %v342, 4294901760
        %v532 = vsub.f32 %v342, %v531
        %v533 = vand.u32 %v532, 4294901760
        %v534 = vsub.f32 %v532, %v533
        %v535 = vand.u32 %v534, 4294901760
        %536 = vmatpush1.msra.mxu0 %v535
        %v537 = vand.u32 %v341, 4294901760
        %v538 = vsub.f32 %v341, %v537
        %v539 = vand.u32 %v538, 4294901760
        %v540 = vsub.f32 %v538, %v539
        %v541 = vand.u32 %v540, 4294901760
        %542 = vmatprep.subr.mxu0 %v541
        %v543 = vand.u32 %v340, 4294901760
        %v544 = vsub.f32 %v340, %v543
        %v545 = vand.u32 %v544, 4294901760
        %v546 = vsub.f32 %v544, %v545
        %v547 = vand.u32 %v546, 4294901760
        %548 = vmatpush1.msra.mxu0 %v547
        %v549 = vand.u32 %v339, 4294901760
        %v550 = vsub.f32 %v339, %v549
        %v551 = vand.u32 %v550, 4294901760
        %v552 = vsub.f32 %v550, %v551
        %v553 = vand.u32 %v552, 4294901760
        %554 = vmatprep.subr.mxu0 %v553
        %v555 = vand.u32 %v338, 4294901760
        %v556 = vsub.f32 %v338, %v555
        %v557 = vand.u32 %v556, 4294901760
        %v558 = vsub.f32 %v556, %v557
        %v559 = vand.u32 %v558, 4294901760
        %560 = vmatpush1.msra.mxu0 %v559
        %v561 = vand.u32 %v337, 4294901760
        %v562 = vsub.f32 %v337, %v561
        %v563 = vand.u32 %v562, 4294901760
        %v564 = vsub.f32 %v562, %v563
        %v565 = vand.u32 %v564, 4294901760
        %566 = vmatprep.subr.mxu0 %v565
        %v567 = vand.u32 %v336, 4294901760
        %v568 = vsub.f32 %v336, %v567
        %v569 = vand.u32 %v568, 4294901760
        %v570 = vsub.f32 %v568, %v569
        %v571 = vand.u32 %v570, 4294901760
        %572 = vmatpush1.msra.mxu0 %v571
        %v573 = vand.u32 %v335, 4294901760
        %v574 = vsub.f32 %v335, %v573
        %v575 = vand.u32 %v574, 4294901760
        %v576 = vsub.f32 %v574, %v575
        %v577 = vand.u32 %v576, 4294901760
        %578 = vmatprep.subr.mxu0 %v577
        %v579 = vand.u32 %v334, 4294901760
        %v580 = vsub.f32 %v334, %v579
        %v581 = vand.u32 %v580, 4294901760
        %v582 = vsub.f32 %v580, %v581
        %v583 = vand.u32 %v582, 4294901760
        %584 = vmatpush1.msra.mxu0 %v583
        %v585 = vand.u32 %v333, 4294901760
        %v586 = vsub.f32 %v333, %v585
        %v587 = vand.u32 %v586, 4294901760
        %v588 = vsub.f32 %v586, %v587
        %v589 = vand.u32 %v588, 4294901760
        %590 = vmatprep.subr.mxu0 %v589
        %v591 = vand.u32 %v332, 4294901760
        %v592 = vsub.f32 %v332, %v591
        %v593 = vand.u32 %v592, 4294901760
        %v594 = vsub.f32 %v592, %v593
        %v595 = vand.u32 %v594, 4294901760
        %596 = vmatpush1.msra.mxu0 %v595
        %v597 = vand.u32 %v331, 4294901760
        %v598 = vsub.f32 %v331, %v597
        %v599 = vand.u32 %v598, 4294901760
        %v600 = vsub.f32 %v598, %v599
        %v601 = vand.u32 %v600, 4294901760
        %602 = vmatprep.subr.mxu0 %v601
        %v603 = vand.u32 %v330, 4294901760
        %v604 = vsub.f32 %v330, %v603
        %v605 = vand.u32 %v604, 4294901760
        %v606 = vsub.f32 %v604, %v605
        %v607 = vand.u32 %v606, 4294901760
        %608 = vmatpush1.msra.mxu0 %v607
        %v609 = vand.u32 %v329, 4294901760
        %v610 = vsub.f32 %v329, %v609
        %v611 = vand.u32 %v610, 4294901760
        %v612 = vsub.f32 %v610, %v611
        %v613 = vand.u32 %v612, 4294901760
        %614 = vmatprep.subr.mxu0 %v613
        %v615 = vand.u32 %v328, 4294901760
        %v616 = vsub.f32 %v328, %v615
        %v617 = vand.u32 %v616, 4294901760
        %v618 = vsub.f32 %v616, %v617
        %v619 = vand.u32 %v618, 4294901760
        %620 = vmatpush1.msra.mxu0 %v619
        %v621 = vand.u32 %v327, 4294901760
        %v622 = vsub.f32 %v327, %v621
        %v623 = vand.u32 %v622, 4294901760
        %v624 = vsub.f32 %v622, %v623
        %v625 = vand.u32 %v624, 4294901760
        %626 = vmatprep.subr.mxu0 %v625
        %v627 = vand.u32 %v326, 4294901760
        %v628 = vsub.f32 %v326, %v627
        %v629 = vand.u32 %v628, 4294901760
        %v630 = vsub.f32 %v628, %v629
        %v631 = vand.u32 %v630, 4294901760
        %632 = vmatpush1.msra.mxu0 %v631
        %v633 = vand.u32 %v325, 4294901760
        %v634 = vsub.f32 %v325, %v633
        %v635 = vand.u32 %v634, 4294901760
        %v636 = vsub.f32 %v634, %v635
        %v637 = vand.u32 %v636, 4294901760
        %638 = vmatprep.subr.mxu0 %v637
        %v639 = vand.u32 %v324, 4294901760
        %v640 = vsub.f32 %v324, %v639
        %v641 = vand.u32 %v640, 4294901760
        %v642 = vsub.f32 %v640, %v641
        %v643 = vand.u32 %v642, 4294901760
        %644 = vmatpush1.msra.mxu0 %v643
        %v645 = vand.u32 %v323, 4294901760
        %v646 = vsub.f32 %v323, %v645
        %v647 = vand.u32 %v646, 4294901760
        %v648 = vsub.f32 %v646, %v647
        %v649 = vand.u32 %v648, 4294901760
        %650 = vmatprep.subr.mxu0 %v649
        %v651 = vand.u32 %v322, 4294901760
        %v652 = vsub.f32 %v322, %v651
        %v653 = vand.u32 %v652, 4294901760
        %v654 = vsub.f32 %v652, %v653
        %v655 = vand.u32 %v654, 4294901760
        %656 = vmatpush1.msra.mxu0 %v655
        %v657 = vand.u32 %v321, 4294901760
        %v658 = vsub.f32 %v321, %v657
        %v659 = vand.u32 %v658, 4294901760
        %v660 = vsub.f32 %v658, %v659
        %v661 = vand.u32 %v660, 4294901760
        %662 = vmatprep.subr.mxu0 %v661
        %v663 = vand.u32 %v320, 4294901760
        %v664 = vsub.f32 %v320, %v663
        %v665 = vand.u32 %v664, 4294901760
        %v666 = vsub.f32 %v664, %v665
        %v667 = vand.u32 %v666, 4294901760
        %668 = vmatpush1.msra.mxu0 %v667
        %v669 = vand.u32 %v319, 4294901760
        %v670 = vsub.f32 %v319, %v669
        %v671 = vand.u32 %v670, 4294901760
        %v672 = vsub.f32 %v670, %v671
        %v673 = vand.u32 %v672, 4294901760
        %674 = vmatprep.subr.mxu0 %v673
        %v675 = vand.u32 %v318, 4294901760
        %v676 = vsub.f32 %v318, %v675
        %v677 = vand.u32 %v676, 4294901760
        %v678 = vsub.f32 %v676, %v677
        %v679 = vand.u32 %v678, 4294901760
        %680 = vmatpush1.msra.mxu0 %v679
        %v681 = vand.u32 %v317, 4294901760
        %v682 = vsub.f32 %v317, %v681
        %v683 = vand.u32 %v682, 4294901760
        %v684 = vsub.f32 %v682, %v683
        %v685 = vand.u32 %v684, 4294901760
        %686 = vmatprep.subr.mxu0 %v685
        %v687 = vand.u32 %v316, 4294901760
        %v688 = vsub.f32 %v316, %v687
        %v689 = vand.u32 %v688, 4294901760
        %v690 = vsub.f32 %v688, %v689
        %v691 = vand.u32 %v690, 4294901760
        %692 = vmatpush1.msra.mxu0 %v691
        %693 = vmatprep.subr.mxu0 0.0
        %694 = vmatpush2.msra.mxu0 0.0
        %695 = vmatprep.subr.mxu0 0.0
        %696 = vmatpush2.msra.mxu0 0.0
        %697 = vmatprep.subr.mxu0 0.0
        %698 = vmatpush2.msra.mxu0 0.0
        %699 = vmatprep.subr.mxu0 0.0
        %700 = vmatpush2.msra.mxu0 0.0
        %701 = vmatprep.subr.mxu0 0.0
        %702 = vmatpush2.msra.mxu0 0.0
        %703 = vmatprep.subr.mxu0 0.0
        %704 = vmatpush2.msra.mxu0 0.0
        %705 = vmatprep.subr.mxu0 0.0
        %706 = vmatpush2.msra.mxu0 0.0
        %707 = vmatprep.subr.mxu0 0.0
        %708 = vmatpush2.msra.mxu0 0.0
        %709 = vmatprep.subr.mxu0 0.0
        %710 = vmatpush2.msra.mxu0 0.0
        %711 = vmatprep.subr.mxu0 0.0
        %712 = vmatpush2.msra.mxu0 0.0
        %713 = vmatprep.subr.mxu0 0.0
        %714 = vmatpush2.msra.mxu0 0.0
        %715 = vmatprep.subr.mxu0 0.0
        %716 = vmatpush2.msra.mxu0 0.0
        %717 = vmatprep.subr.mxu0 0.0
        %718 = vmatpush2.msra.mxu0 0.0
        %719 = vmatprep.subr.mxu0 0.0
        %720 = vmatpush2.msra.mxu0 0.0
        %721 = vmatprep.subr.mxu0 0.0
        %722 = vmatpush2.msra.mxu0 0.0
        %723 = vmatprep.subr.mxu0 0.0
        %724 = vmatpush2.msra.mxu0 0.0
        %725 = vmatprep.mubr.f32.mxu0 0.0
        %v726 = vand.u32 %v356, 4294901760
        %727 = vmatmul.mubr.f32.gmra.mxu0 %v726
        %v728 = vpop.f32.mrf.mxu0
        %v729 = vadd.f32 %v464, %v728
        %v730 = vpop.f32.mrf.mxu0
        %v731 = vadd.f32 %v466, %v730
        %732 = vmatprep.mubr.f32.mxu0 0.0
        %v733 = vand.u32 %v357, 4294901760
        %734 = vmatmul.mubr.f32.gmra.mxu0 %v733
        %v735 = vpop.f32.mrf.mxu0
        %v736 = vadd.f32 %v475, %v735
        %v737 = vpop.f32.mrf.mxu0
        %v738 = vadd.f32 %v477, %v737
        %739 = vmatprep.mubr.f32.mxu0 0.0
        %v740 = vand.u32 %v358, 4294901760
        %741 = vmatmul.mubr.f32.gmra.mxu0 %v740
        %v742 = vpop.f32.mrf.mxu0
        %v743 = vadd.f32 %v486, %v742
        %v744 = vpop.f32.mrf.mxu0
        %v745 = vadd.f32 %v488, %v744
        %746 = vmatprep.mubr.f32.mxu0 0.0
        %v747 = vand.u32 %v359, 4294901760
        %748 = vmatmul.mubr.f32.gmra.mxu0 %v747
        %v749 = vpop.f32.mrf.mxu0
        %v750 = vadd.f32 %v497, %v749
        %v751 = vpop.f32.mrf.mxu0
        %v752 = vadd.f32 %v499, %v751
        %753 = vdwg.mxu0
        %v754 = vand.u32 %v347, 4294901760
        %v755 = vsub.f32 %v347, %v754
        %756 = vmatprep.subr.mxu0 %v755
        %v757 = vand.u32 %v346, 4294901760
        %v758 = vsub.f32 %v346, %v757
        %759 = vmatpush1.msra.mxu0 %v758
        %v760 = vand.u32 %v345, 4294901760
        %v761 = vsub.f32 %v345, %v760
        %762 = vmatprep.subr.mxu0 %v761
        %v763 = vand.u32 %v344, 4294901760
        %v764 = vsub.f32 %v344, %v763
        %765 = vmatpush1.msra.mxu0 %v764
        %v766 = vand.u32 %v343, 4294901760
        %v767 = vsub.f32 %v343, %v766
        %768 = vmatprep.subr.mxu0 %v767
        %v769 = vand.u32 %v342, 4294901760
        %v770 = vsub.f32 %v342, %v769
        %771 = vmatpush1.msra.mxu0 %v770
        %v772 = vand.u32 %v341, 4294901760
        %v773 = vsub.f32 %v341, %v772
        %774 = vmatprep.subr.mxu0 %v773
        %v775 = vand.u32 %v340, 4294901760
        %v776 = vsub.f32 %v340, %v775
        %777 = vmatpush1.msra.mxu0 %v776
        %v778 = vand.u32 %v339, 4294901760
        %v779 = vsub.f32 %v339, %v778
        %780 = vmatprep.subr.mxu0 %v779
        %v781 = vand.u32 %v338, 4294901760
        %v782 = vsub.f32 %v338, %v781
        %783 = vmatpush1.msra.mxu0 %v782
        %v784 = vand.u32 %v337, 4294901760
        %v785 = vsub.f32 %v337, %v784
        %786 = vmatprep.subr.mxu0 %v785
        %v787 = vand.u32 %v336, 4294901760
        %v788 = vsub.f32 %v336, %v787
        %789 = vmatpush1.msra.mxu0 %v788
        %v790 = vand.u32 %v335, 4294901760
        %v791 = vsub.f32 %v335, %v790
        %792 = vmatprep.subr.mxu0 %v791
        %v793 = vand.u32 %v334, 4294901760
        %v794 = vsub.f32 %v334, %v793
        %795 = vmatpush1.msra.mxu0 %v794
        %v796 = vand.u32 %v333, 4294901760
        %v797 = vsub.f32 %v333, %v796
        %798 = vmatprep.subr.mxu0 %v797
        %v799 = vand.u32 %v332, 4294901760
        %v800 = vsub.f32 %v332, %v799
        %801 = vmatpush1.msra.mxu0 %v800
        %v802 = vand.u32 %v331, 4294901760
        %v803 = vsub.f32 %v331, %v802
        %804 = vmatprep.subr.mxu0 %v803
        %v805 = vand.u32 %v330, 4294901760
        %v806 = vsub.f32 %v330, %v805
        %807 = vmatpush1.msra.mxu0 %v806
        %v808 = vand.u32 %v329, 4294901760
        %v809 = vsub.f32 %v329, %v808
        %810 = vmatprep.subr.mxu0 %v809
        %v811 = vand.u32 %v328, 4294901760
        %v812 = vsub.f32 %v328, %v811
        %813 = vmatpush1.msra.mxu0 %v812
        %v814 = vand.u32 %v327, 4294901760
        %v815 = vsub.f32 %v327, %v814
        %816 = vmatprep.subr.mxu0 %v815
        %v817 = vand.u32 %v326, 4294901760
        %v818 = vsub.f32 %v326, %v817
        %819 = vmatpush1.msra.mxu0 %v818
        %v820 = vand.u32 %v325, 4294901760
        %v821 = vsub.f32 %v325, %v820
        %822 = vmatprep.subr.mxu0 %v821
        %v823 = vand.u32 %v324, 4294901760
        %v824 = vsub.f32 %v324, %v823
        %825 = vmatpush1.msra.mxu0 %v824
        %v826 = vand.u32 %v323, 4294901760
        %v827 = vsub.f32 %v323, %v826
        %828 = vmatprep.subr.mxu0 %v827
        %v829 = vand.u32 %v322, 4294901760
        %v830 = vsub.f32 %v322, %v829
        %831 = vmatpush1.msra.mxu0 %v830
        %v832 = vand.u32 %v321, 4294901760
        %v833 = vsub.f32 %v321, %v832
        %834 = vmatprep.subr.mxu0 %v833
        %v835 = vand.u32 %v320, 4294901760
        %v836 = vsub.f32 %v320, %v835
        %837 = vmatpush1.msra.mxu0 %v836
        %v838 = vand.u32 %v319, 4294901760
        %v839 = vsub.f32 %v319, %v838
        %840 = vmatprep.subr.mxu0 %v839
        %v841 = vand.u32 %v318, 4294901760
        %v842 = vsub.f32 %v318, %v841
        %843 = vmatpush1.msra.mxu0 %v842
        %v844 = vand.u32 %v317, 4294901760
        %v845 = vsub.f32 %v317, %v844
        %846 = vmatprep.subr.mxu0 %v845
        %v847 = vand.u32 %v316, 4294901760
        %v848 = vsub.f32 %v316, %v847
        %849 = vmatpush1.msra.mxu0 %v848
        %850 = vmatprep.subr.mxu0 0.0
        %851 = vmatpush2.msra.mxu0 0.0
        %852 = vmatprep.subr.mxu0 0.0
        %853 = vmatpush2.msra.mxu0 0.0
        %854 = vmatprep.subr.mxu0 0.0
        %855 = vmatpush2.msra.mxu0 0.0
        %856 = vmatprep.subr.mxu0 0.0
        %857 = vmatpush2.msra.mxu0 0.0
        %858 = vmatprep.subr.mxu0 0.0
        %859 = vmatpush2.msra.mxu0 0.0
        %860 = vmatprep.subr.mxu0 0.0
        %861 = vmatpush2.msra.mxu0 0.0
        %862 = vmatprep.subr.mxu0 0.0
        %863 = vmatpush2.msra.mxu0 0.0
        %864 = vmatprep.subr.mxu0 0.0
        %865 = vmatpush2.msra.mxu0 0.0
        %866 = vmatprep.subr.mxu0 0.0
        %867 = vmatpush2.msra.mxu0 0.0
        %868 = vmatprep.subr.mxu0 0.0
        %869 = vmatpush2.msra.mxu0 0.0
        %870 = vmatprep.subr.mxu0 0.0
        %871 = vmatpush2.msra.mxu0 0.0
        %872 = vmatprep.subr.mxu0 0.0
        %873 = vmatpush2.msra.mxu0 0.0
        %874 = vmatprep.subr.mxu0 0.0
        %875 = vmatpush2.msra.mxu0 0.0
        %876 = vmatprep.subr.mxu0 0.0
        %877 = vmatpush2.msra.mxu0 0.0
        %878 = vmatprep.subr.mxu0 0.0
        %879 = vmatpush2.msra.mxu0 0.0
        %880 = vmatprep.subr.mxu0 0.0
        %881 = vmatpush2.msra.mxu0 0.0
        %882 = vmatprep.mubr.f32.mxu0 0.0
        %v883 = vand.u32 %v356, 4294901760
        %v884 = vsub.f32 %v356, %v883
        %885 = vmatmul.mubr.f32.gmra.mxu0 %v884
        %v886 = vpop.f32.mrf.mxu0
        %v887 = vadd.f32 %v729, %v886
        %v888 = vpop.f32.mrf.mxu0
        %v889 = vadd.f32 %v731, %v888
        %890 = vmatprep.mubr.f32.mxu0 0.0
        %v891 = vand.u32 %v357, 4294901760
        %v892 = vsub.f32 %v357, %v891
        %893 = vmatmul.mubr.f32.gmra.mxu0 %v892
        %v894 = vpop.f32.mrf.mxu0
        %v895 = vadd.f32 %v736, %v894
        %v896 = vpop.f32.mrf.mxu0
        %v897 = vadd.f32 %v738, %v896
        %898 = vmatprep.mubr.f32.mxu0 0.0
        %v899 = vand.u32 %v358, 4294901760
        %v900 = vsub.f32 %v358, %v899
        %901 = vmatmul.mubr.f32.gmra.mxu0 %v900
        %v902 = vpop.f32.mrf.mxu0
        %v903 = vadd.f32 %v743, %v902
        %v904 = vpop.f32.mrf.mxu0
        %v905 = vadd.f32 %v745, %v904
        %906 = vmatprep.mubr.f32.mxu0 0.0
        %v907 = vand.u32 %v359, 4294901760
        %v908 = vsub.f32 %v359, %v907
        %909 = vmatmul.mubr.f32.gmra.mxu0 %v908
        %v910 = vpop.f32.mrf.mxu0
        %v911 = vadd.f32 %v750, %v910
        %v912 = vpop.f32.mrf.mxu0
        %v913 = vadd.f32 %v752, %v912
        %914 = vdwg.mxu0
        %v915 = vand.u32 %v347, 4294901760
        %916 = vmatprep.subr.mxu0 %v915
        %v917 = vand.u32 %v346, 4294901760
        %918 = vmatpush1.msra.mxu0 %v917
        %v919 = vand.u32 %v345, 4294901760
        %920 = vmatprep.subr.mxu0 %v919
        %v921 = vand.u32 %v344, 4294901760
        %922 = vmatpush1.msra.mxu0 %v921
        %v923 = vand.u32 %v343, 4294901760
        %924 = vmatprep.subr.mxu0 %v923
        %v925 = vand.u32 %v342, 4294901760
        %926 = vmatpush1.msra.mxu0 %v925
        %v927 = vand.u32 %v341, 4294901760
        %928 = vmatprep.subr.mxu0 %v927
        %v929 = vand.u32 %v340, 4294901760
        %930 = vmatpush1.msra.mxu0 %v929
        %v931 = vand.u32 %v339, 4294901760
        %932 = vmatprep.subr.mxu0 %v931
        %v933 = vand.u32 %v338, 4294901760
        %934 = vmatpush1.msra.mxu0 %v933
        %v935 = vand.u32 %v337, 4294901760
        %936 = vmatprep.subr.mxu0 %v935
        %v937 = vand.u32 %v336, 4294901760
        %938 = vmatpush1.msra.mxu0 %v937
        %v939 = vand.u32 %v335, 4294901760
        %940 = vmatprep.subr.mxu0 %v939
        %v941 = vand.u32 %v334, 4294901760
        %942 = vmatpush1.msra.mxu0 %v941
        %v943 = vand.u32 %v333, 4294901760
        %944 = vmatprep.subr.mxu0 %v943
        %v945 = vand.u32 %v332, 4294901760
        %946 = vmatpush1.msra.mxu0 %v945
        %v947 = vand.u32 %v331, 4294901760
        %948 = vmatprep.subr.mxu0 %v947
        %v949 = vand.u32 %v330, 4294901760
        %950 = vmatpush1.msra.mxu0 %v949
        %v951 = vand.u32 %v329, 4294901760
        %952 = vmatprep.subr.mxu0 %v951
        %v953 = vand.u32 %v328, 4294901760
        %954 = vmatpush1.msra.mxu0 %v953
        %v955 = vand.u32 %v327, 4294901760
        %956 = vmatprep.subr.mxu0 %v955
        %v957 = vand.u32 %v326, 4294901760
        %958 = vmatpush1.msra.mxu0 %v957
        %v959 = vand.u32 %v325, 4294901760
        %960 = vmatprep.subr.mxu0 %v959
        %v961 = vand.u32 %v324, 4294901760
        %962 = vmatpush1.msra.mxu0 %v961
        %v963 = vand.u32 %v323, 4294901760
        %964 = vmatprep.subr.mxu0 %v963
        %v965 = vand.u32 %v322, 4294901760
        %966 = vmatpush1.msra.mxu0 %v965
        %v967 = vand.u32 %v321, 4294901760
        %968 = vmatprep.subr.mxu0 %v967
        %v969 = vand.u32 %v320, 4294901760
        %970 = vmatpush1.msra.mxu0 %v969
        %v971 = vand.u32 %v319, 4294901760
        %972 = vmatprep.subr.mxu0 %v971
        %v973 = vand.u32 %v318, 4294901760
        %974 = vmatpush1.msra.mxu0 %v973
        %v975 = vand.u32 %v317, 4294901760
        %976 = vmatprep.subr.mxu0 %v975
        %v977 = vand.u32 %v316, 4294901760
        %978 = vmatpush1.msra.mxu0 %v977
        %979 = vmatprep.subr.mxu0 0.0
        %980 = vmatpush2.msra.mxu0 0.0
        %981 = vmatprep.subr.mxu0 0.0
        %982 = vmatpush2.msra.mxu0 0.0
        %983 = vmatprep.subr.mxu0 0.0
        %984 = vmatpush2.msra.mxu0 0.0
        %985 = vmatprep.subr.mxu0 0.0
        %986 = vmatpush2.msra.mxu0 0.0
        %987 = vmatprep.subr.mxu0 0.0
        %988 = vmatpush2.msra.mxu0 0.0
        %989 = vmatprep.subr.mxu0 0.0
        %990 = vmatpush2.msra.mxu0 0.0
        %991 = vmatprep.subr.mxu0 0.0
        %992 = vmatpush2.msra.mxu0 0.0
        %993 = vmatprep.subr.mxu0 0.0
        %994 = vmatpush2.msra.mxu0 0.0
        %995 = vmatprep.subr.mxu0 0.0
        %996 = vmatpush2.msra.mxu0 0.0
        %997 = vmatprep.subr.mxu0 0.0
        %998 = vmatpush2.msra.mxu0 0.0
        %999 = vmatprep.subr.mxu0 0.0
        %1000 = vmatpush2.msra.mxu0 0.0
        %1001 = vmatprep.subr.mxu0 0.0
        %1002 = vmatpush2.msra.mxu0 0.0
        %1003 = vmatprep.subr.mxu0 0.0
        %1004 = vmatpush2.msra.mxu0 0.0
        %1005 = vmatprep.subr.mxu0 0.0
        %1006 = vmatpush2.msra.mxu0 0.0
        %1007 = vmatprep.subr.mxu0 0.0
        %1008 = vmatpush2.msra.mxu0 0.0
        %1009 = vmatprep.subr.mxu0 0.0
        %1010 = vmatpush2.msra.mxu0 0.0
        %1011 = vmatprep.mubr.f32.mxu0 0.0
        %v1012 = vand.u32 %v356, 4294901760
        %v1013 = vsub.f32 %v356, %v1012
        %v1014 = vand.u32 %v1013, 4294901760
        %1015 = vmatmul.mubr.f32.gmra.mxu0 %v1014
        %v1016 = vpop.f32.mrf.mxu0
        %v1017 = vadd.f32 %v887, %v1016
        %v1018 = vpop.f32.mrf.mxu0
        %v1019 = vadd.f32 %v889, %v1018
        %1020 = vmatprep.mubr.f32.mxu0 0.0
        %v1021 = vand.u32 %v357, 4294901760
        %v1022 = vsub.f32 %v357, %v1021
        %v1023 = vand.u32 %v1022, 4294901760
        %1024 = vmatmul.mubr.f32.gmra.mxu0 %v1023
        %v1025 = vpop.f32.mrf.mxu0
        %v1026 = vadd.f32 %v895, %v1025
        %v1027 = vpop.f32.mrf.mxu0
        %v1028 = vadd.f32 %v897, %v1027
        %1029 = vmatprep.mubr.f32.mxu0 0.0
        %v1030 = vand.u32 %v358, 4294901760
        %v1031 = vsub.f32 %v358, %v1030
        %v1032 = vand.u32 %v1031, 4294901760
        %1033 = vmatmul.mubr.f32.gmra.mxu0 %v1032
        %v1034 = vpop.f32.mrf.mxu0
        %v1035 = vadd.f32 %v903, %v1034
        %v1036 = vpop.f32.mrf.mxu0
        %v1037 = vadd.f32 %v905, %v1036
        %1038 = vmatprep.mubr.f32.mxu0 0.0
        %v1039 = vand.u32 %v359, 4294901760
        %v1040 = vsub.f32 %v359, %v1039
        %v1041 = vand.u32 %v1040, 4294901760
        %1042 = vmatmul.mubr.f32.gmra.mxu0 %v1041
        %v1043 = vpop.f32.mrf.mxu0
        %v1044 = vadd.f32 %v911, %v1043
        %v1045 = vpop.f32.mrf.mxu0
        %v1046 = vadd.f32 %v913, %v1045
        %1047 = vdwg.mxu0
        %v1048 = vand.u32 %v347, 4294901760
        %v1049 = vsub.f32 %v347, %v1048
        %v1050 = vand.u32 %v1049, 4294901760
        %1051 = vmatprep.subr.mxu0 %v1050
        %v1052 = vand.u32 %v346, 4294901760
        %v1053 = vsub.f32 %v346, %v1052
        %v1054 = vand.u32 %v1053, 4294901760
        %1055 = vmatpush1.msra.mxu0 %v1054
        %v1056 = vand.u32 %v345, 4294901760
        %v1057 = vsub.f32 %v345, %v1056
        %v1058 = vand.u32 %v1057, 4294901760
        %1059 = vmatprep.subr.mxu0 %v1058
        %v1060 = vand.u32 %v344, 4294901760
        %v1061 = vsub.f32 %v344, %v1060
        %v1062 = vand.u32 %v1061, 4294901760
        %1063 = vmatpush1.msra.mxu0 %v1062
        %v1064 = vand.u32 %v343, 4294901760
        %v1065 = vsub.f32 %v343, %v1064
        %v1066 = vand.u32 %v1065, 4294901760
        %1067 = vmatprep.subr.mxu0 %v1066
        %v1068 = vand.u32 %v342, 4294901760
        %v1069 = vsub.f32 %v342, %v1068
        %v1070 = vand.u32 %v1069, 4294901760
        %1071 = vmatpush1.msra.mxu0 %v1070
        %v1072 = vand.u32 %v341, 4294901760
        %v1073 = vsub.f32 %v341, %v1072
        %v1074 = vand.u32 %v1073, 4294901760
        %1075 = vmatprep.subr.mxu0 %v1074
        %v1076 = vand.u32 %v340, 4294901760
        %v1077 = vsub.f32 %v340, %v1076
        %v1078 = vand.u32 %v1077, 4294901760
        %1079 = vmatpush1.msra.mxu0 %v1078
        %v1080 = vand.u32 %v339, 4294901760
        %v1081 = vsub.f32 %v339, %v1080
        %v1082 = vand.u32 %v1081, 4294901760
        %1083 = vmatprep.subr.mxu0 %v1082
        %v1084 = vand.u32 %v338, 4294901760
        %v1085 = vsub.f32 %v338, %v1084
        %v1086 = vand.u32 %v1085, 4294901760
        %1087 = vmatpush1.msra.mxu0 %v1086
        %v1088 = vand.u32 %v337, 4294901760
        %v1089 = vsub.f32 %v337, %v1088
        %v1090 = vand.u32 %v1089, 4294901760
        %1091 = vmatprep.subr.mxu0 %v1090
        %v1092 = vand.u32 %v336, 4294901760
        %v1093 = vsub.f32 %v336, %v1092
        %v1094 = vand.u32 %v1093, 4294901760
        %1095 = vmatpush1.msra.mxu0 %v1094
        %v1096 = vand.u32 %v335, 4294901760
        %v1097 = vsub.f32 %v335, %v1096
        %v1098 = vand.u32 %v1097, 4294901760
        %1099 = vmatprep.subr.mxu0 %v1098
        %v1100 = vand.u32 %v334, 4294901760
        %v1101 = vsub.f32 %v334, %v1100
        %v1102 = vand.u32 %v1101, 4294901760
        %1103 = vmatpush1.msra.mxu0 %v1102
        %v1104 = vand.u32 %v333, 4294901760
        %v1105 = vsub.f32 %v333, %v1104
        %v1106 = vand.u32 %v1105, 4294901760
        %1107 = vmatprep.subr.mxu0 %v1106
        %v1108 = vand.u32 %v332, 4294901760
        %v1109 = vsub.f32 %v332, %v1108
        %v1110 = vand.u32 %v1109, 4294901760
        %1111 = vmatpush1.msra.mxu0 %v1110
        %v1112 = vand.u32 %v331, 4294901760
        %v1113 = vsub.f32 %v331, %v1112
        %v1114 = vand.u32 %v1113, 4294901760
        %1115 = vmatprep.subr.mxu0 %v1114
        %v1116 = vand.u32 %v330, 4294901760
        %v1117 = vsub.f32 %v330, %v1116
        %v1118 = vand.u32 %v1117, 4294901760
        %1119 = vmatpush1.msra.mxu0 %v1118
        %v1120 = vand.u32 %v329, 4294901760
        %v1121 = vsub.f32 %v329, %v1120
        %v1122 = vand.u32 %v1121, 4294901760
        %1123 = vmatprep.subr.mxu0 %v1122
        %v1124 = vand.u32 %v328, 4294901760
        %v1125 = vsub.f32 %v328, %v1124
        %v1126 = vand.u32 %v1125, 4294901760
        %1127 = vmatpush1.msra.mxu0 %v1126
        %v1128 = vand.u32 %v327, 4294901760
        %v1129 = vsub.f32 %v327, %v1128
        %v1130 = vand.u32 %v1129, 4294901760
        %1131 = vmatprep.subr.mxu0 %v1130
        %v1132 = vand.u32 %v326, 4294901760
        %v1133 = vsub.f32 %v326, %v1132
        %v1134 = vand.u32 %v1133, 4294901760
        %1135 = vmatpush1.msra.mxu0 %v1134
        %v1136 = vand.u32 %v325, 4294901760
        %v1137 = vsub.f32 %v325, %v1136
        %v1138 = vand.u32 %v1137, 4294901760
        %1139 = vmatprep.subr.mxu0 %v1138
        %v1140 = vand.u32 %v324, 4294901760
        %v1141 = vsub.f32 %v324, %v1140
        %v1142 = vand.u32 %v1141, 4294901760
        %1143 = vmatpush1.msra.mxu0 %v1142
        %v1144 = vand.u32 %v323, 4294901760
        %v1145 = vsub.f32 %v323, %v1144
        %v1146 = vand.u32 %v1145, 4294901760
        %1147 = vmatprep.subr.mxu0 %v1146
        %v1148 = vand.u32 %v322, 4294901760
        %v1149 = vsub.f32 %v322, %v1148
        %v1150 = vand.u32 %v1149, 4294901760
        %1151 = vmatpush1.msra.mxu0 %v1150
        %v1152 = vand.u32 %v321, 4294901760
        %v1153 = vsub.f32 %v321, %v1152
        %v1154 = vand.u32 %v1153, 4294901760
        %1155 = vmatprep.subr.mxu0 %v1154
        %v1156 = vand.u32 %v320, 4294901760
        %v1157 = vsub.f32 %v320, %v1156
        %v1158 = vand.u32 %v1157, 4294901760
        %1159 = vmatpush1.msra.mxu0 %v1158
        %v1160 = vand.u32 %v319, 4294901760
        %v1161 = vsub.f32 %v319, %v1160
        %v1162 = vand.u32 %v1161, 4294901760
        %1163 = vmatprep.subr.mxu0 %v1162
        %v1164 = vand.u32 %v318, 4294901760
        %v1165 = vsub.f32 %v318, %v1164
        %v1166 = vand.u32 %v1165, 4294901760
        %1167 = vmatpush1.msra.mxu0 %v1166
        %v1168 = vand.u32 %v317, 4294901760
        %v1169 = vsub.f32 %v317, %v1168
        %v1170 = vand.u32 %v1169, 4294901760
        %1171 = vmatprep.subr.mxu0 %v1170
        %v1172 = vand.u32 %v316, 4294901760
        %v1173 = vsub.f32 %v316, %v1172
        %v1174 = vand.u32 %v1173, 4294901760
        %1175 = vmatpush1.msra.mxu0 %v1174
        %1176 = vmatprep.subr.mxu0 0.0
        %1177 = vmatpush2.msra.mxu0 0.0
        %1178 = vmatprep.subr.mxu0 0.0
        %1179 = vmatpush2.msra.mxu0 0.0
        %1180 = vmatprep.subr.mxu0 0.0
        %1181 = vmatpush2.msra.mxu0 0.0
        %1182 = vmatprep.subr.mxu0 0.0
        %1183 = vmatpush2.msra.mxu0 0.0
        %1184 = vmatprep.subr.mxu0 0.0
        %1185 = vmatpush2.msra.mxu0 0.0
        %1186 = vmatprep.subr.mxu0 0.0
        %1187 = vmatpush2.msra.mxu0 0.0
        %1188 = vmatprep.subr.mxu0 0.0
        %1189 = vmatpush2.msra.mxu0 0.0
        %1190 = vmatprep.subr.mxu0 0.0
        %1191 = vmatpush2.msra.mxu0 0.0
        %1192 = vmatprep.subr.mxu0 0.0
        %1193 = vmatpush2.msra.mxu0 0.0
        %1194 = vmatprep.subr.mxu0 0.0
        %1195 = vmatpush2.msra.mxu0 0.0
        %1196 = vmatprep.subr.mxu0 0.0
        %1197 = vmatpush2.msra.mxu0 0.0
        %1198 = vmatprep.subr.mxu0 0.0
        %1199 = vmatpush2.msra.mxu0 0.0
        %1200 = vmatprep.subr.mxu0 0.0
        %1201 = vmatpush2.msra.mxu0 0.0
        %1202 = vmatprep.subr.mxu0 0.0
        %1203 = vmatpush2.msra.mxu0 0.0
        %1204 = vmatprep.subr.mxu0 0.0
        %1205 = vmatpush2.msra.mxu0 0.0
        %1206 = vmatprep.subr.mxu0 0.0
        %1207 = vmatpush2.msra.mxu0 0.0
        %1208 = vmatprep.mubr.f32.mxu0 0.0
        %v1209 = vand.u32 %v356, 4294901760
        %1210 = vmatmul.mubr.f32.gmra.mxu0 %v1209
        %v1211 = vpop.f32.mrf.mxu0
        %v1212 = vadd.f32 %v1017, %v1211
        %v1213 = vpop.f32.mrf.mxu0
        %v1214 = vadd.f32 %v1019, %v1213
        %1215 = vmatprep.mubr.f32.mxu0 0.0
        %v1216 = vand.u32 %v357, 4294901760
        %1217 = vmatmul.mubr.f32.gmra.mxu0 %v1216
        %v1218 = vpop.f32.mrf.mxu0
        %v1219 = vadd.f32 %v1026, %v1218
        %v1220 = vpop.f32.mrf.mxu0
        %v1221 = vadd.f32 %v1028, %v1220
        %1222 = vmatprep.mubr.f32.mxu0 0.0
        %v1223 = vand.u32 %v358, 4294901760
        %1224 = vmatmul.mubr.f32.gmra.mxu0 %v1223
        %v1225 = vpop.f32.mrf.mxu0
        %v1226 = vadd.f32 %v1035, %v1225
        %v1227 = vpop.f32.mrf.mxu0
        %v1228 = vadd.f32 %v1037, %v1227
        %1229 = vmatprep.mubr.f32.mxu0 0.0
        %v1230 = vand.u32 %v359, 4294901760
        %1231 = vmatmul.mubr.f32.gmra.mxu0 %v1230
        %v1232 = vpop.f32.mrf.mxu0
        %v1233 = vadd.f32 %v1044, %v1232
        %v1234 = vpop.f32.mrf.mxu0
        %v1235 = vadd.f32 %v1046, %v1234
        %1236 = vdwg.mxu0
        %v1237 = vand.u32 %v347, 4294901760
        %1238 = vmatprep.subr.mxu0 %v1237
        %v1239 = vand.u32 %v346, 4294901760
        %1240 = vmatpush1.msra.mxu0 %v1239
        %v1241 = vand.u32 %v345, 4294901760
        %1242 = vmatprep.subr.mxu0 %v1241
        %v1243 = vand.u32 %v344, 4294901760
        %1244 = vmatpush1.msra.mxu0 %v1243
        %v1245 = vand.u32 %v343, 4294901760
        %1246 = vmatprep.subr.mxu0 %v1245
        %v1247 = vand.u32 %v342, 4294901760
        %1248 = vmatpush1.msra.mxu0 %v1247
        %v1249 = vand.u32 %v341, 4294901760
        %1250 = vmatprep.subr.mxu0 %v1249
        %v1251 = vand.u32 %v340, 4294901760
        %1252 = vmatpush1.msra.mxu0 %v1251
        %v1253 = vand.u32 %v339, 4294901760
        %1254 = vmatprep.subr.mxu0 %v1253
        %v1255 = vand.u32 %v338, 4294901760
        %1256 = vmatpush1.msra.mxu0 %v1255
        %v1257 = vand.u32 %v337, 4294901760
        %1258 = vmatprep.subr.mxu0 %v1257
        %v1259 = vand.u32 %v336, 4294901760
        %1260 = vmatpush1.msra.mxu0 %v1259
        %v1261 = vand.u32 %v335, 4294901760
        %1262 = vmatprep.subr.mxu0 %v1261
        %v1263 = vand.u32 %v334, 4294901760
        %1264 = vmatpush1.msra.mxu0 %v1263
        %v1265 = vand.u32 %v333, 4294901760
        %1266 = vmatprep.subr.mxu0 %v1265
        %v1267 = vand.u32 %v332, 4294901760
        %1268 = vmatpush1.msra.mxu0 %v1267
        %v1269 = vand.u32 %v331, 4294901760
        %1270 = vmatprep.subr.mxu0 %v1269
        %v1271 = vand.u32 %v330, 4294901760
        %1272 = vmatpush1.msra.mxu0 %v1271
        %v1273 = vand.u32 %v329, 4294901760
        %1274 = vmatprep.subr.mxu0 %v1273
        %v1275 = vand.u32 %v328, 4294901760
        %1276 = vmatpush1.msra.mxu0 %v1275
        %v1277 = vand.u32 %v327, 4294901760
        %1278 = vmatprep.subr.mxu0 %v1277
        %v1279 = vand.u32 %v326, 4294901760
        %1280 = vmatpush1.msra.mxu0 %v1279
        %v1281 = vand.u32 %v325, 4294901760
        %1282 = vmatprep.subr.mxu0 %v1281
        %v1283 = vand.u32 %v324, 4294901760
        %1284 = vmatpush1.msra.mxu0 %v1283
        %v1285 = vand.u32 %v323, 4294901760
        %1286 = vmatprep.subr.mxu0 %v1285
        %v1287 = vand.u32 %v322, 4294901760
        %1288 = vmatpush1.msra.mxu0 %v1287
        %v1289 = vand.u32 %v321, 4294901760
        %1290 = vmatprep.subr.mxu0 %v1289
        %v1291 = vand.u32 %v320, 4294901760
        %1292 = vmatpush1.msra.mxu0 %v1291
        %v1293 = vand.u32 %v319, 4294901760
        %1294 = vmatprep.subr.mxu0 %v1293
        %v1295 = vand.u32 %v318, 4294901760
        %1296 = vmatpush1.msra.mxu0 %v1295
        %v1297 = vand.u32 %v317, 4294901760
        %1298 = vmatprep.subr.mxu0 %v1297
        %v1299 = vand.u32 %v316, 4294901760
        %1300 = vmatpush1.msra.mxu0 %v1299
        %1301 = vmatprep.subr.mxu0 0.0
        %1302 = vmatpush2.msra.mxu0 0.0
        %1303 = vmatprep.subr.mxu0 0.0
        %1304 = vmatpush2.msra.mxu0 0.0
        %1305 = vmatprep.subr.mxu0 0.0
        %1306 = vmatpush2.msra.mxu0 0.0
        %1307 = vmatprep.subr.mxu0 0.0
        %1308 = vmatpush2.msra.mxu0 0.0
        %1309 = vmatprep.subr.mxu0 0.0
        %1310 = vmatpush2.msra.mxu0 0.0
        %1311 = vmatprep.subr.mxu0 0.0
        %1312 = vmatpush2.msra.mxu0 0.0
        %1313 = vmatprep.subr.mxu0 0.0
        %1314 = vmatpush2.msra.mxu0 0.0
        %1315 = vmatprep.subr.mxu0 0.0
        %1316 = vmatpush2.msra.mxu0 0.0
        %1317 = vmatprep.subr.mxu0 0.0
        %1318 = vmatpush2.msra.mxu0 0.0
        %1319 = vmatprep.subr.mxu0 0.0
        %1320 = vmatpush2.msra.mxu0 0.0
        %1321 = vmatprep.subr.mxu0 0.0
        %1322 = vmatpush2.msra.mxu0 0.0
        %1323 = vmatprep.subr.mxu0 0.0
        %1324 = vmatpush2.msra.mxu0 0.0
        %1325 = vmatprep.subr.mxu0 0.0
        %1326 = vmatpush2.msra.mxu0 0.0
        %1327 = vmatprep.subr.mxu0 0.0
        %1328 = vmatpush2.msra.mxu0 0.0
        %1329 = vmatprep.subr.mxu0 0.0
        %1330 = vmatpush2.msra.mxu0 0.0
        %1331 = vmatprep.subr.mxu0 0.0
        %1332 = vmatpush2.msra.mxu0 0.0
        %1333 = vmatprep.mubr.f32.mxu0 0.0
        %v1334 = vand.u32 %v356, 4294901760
        %1335 = vmatmul.mubr.f32.gmra.mxu0 %v1334
        %v1336 = vpop.f32.mrf.mxu0
        %v1337 = vadd.f32 %v1212, %v1336
        %v1338 = vpop.f32.mrf.mxu0
        %v1339 = vadd.f32 %v1214, %v1338
        %1340 = vmatprep.mubr.f32.mxu0 0.0
        %v1341 = vand.u32 %v357, 4294901760
        %1342 = vmatmul.mubr.f32.gmra.mxu0 %v1341
        %v1343 = vpop.f32.mrf.mxu0
        %v1344 = vadd.f32 %v1219, %v1343
        %v1345 = vpop.f32.mrf.mxu0
        %v1346 = vadd.f32 %v1221, %v1345
        %1347 = vmatprep.mubr.f32.mxu0 0.0
        %v1348 = vand.u32 %v358, 4294901760
        %1349 = vmatmul.mubr.f32.gmra.mxu0 %v1348
        %v1350 = vpop.f32.mrf.mxu0
        %v1351 = vadd.f32 %v1226, %v1350
        %v1352 = vpop.f32.mrf.mxu0
        %v1353 = vadd.f32 %v1228, %v1352
        %1354 = vmatprep.mubr.f32.mxu0 0.0
        %v1355 = vand.u32 %v359, 4294901760
        %1356 = vmatmul.mubr.f32.gmra.mxu0 %v1355
        %v1357 = vpop.f32.mrf.mxu0
        %v1358 = vadd.f32 %v1233, %v1357
        %v1359 = vpop.f32.mrf.mxu0
        %v1360 = vadd.f32 %v1235, %v1359
        %1361 = vdwg.mxu0
        %v1362 = vadd.f32 %v348, %v1337
        %v1363 = vadd.f32 %v349, %v1339
        %v1364 = vadd.f32 %v350, %v1344
        %v1365 = vadd.f32 %v351, %v1346
        %v1366 = vadd.f32 %v352, %v1351
        %v1367 = vadd.f32 %v353, %v1353
        %v1368 = vadd.f32 %v354, %v1358
        %v1369 = vadd.f32 %v355, %v1360
        %1370 = vst [vmem:[%s193] sm:$0xff] %v1362
        %1371 = vst [vmem:[%s193 + $0x8] sm:$0xff] %v1363
        %1372 = vst [vmem:[%s193 + $0x10] sm:$0xff] %v1364
        %1373 = vst [vmem:[%s193 + $0x18] sm:$0xff] %v1365
        %1374 = vst [vmem:[%s193 + $0x20] sm:$0xff] %v1366
        %1375 = vst [vmem:[%s193 + $0x28] sm:$0xff] %v1367
        %1376 = vst [vmem:[%s193 + $0x30] sm:$0xff] %v1368
        %1377 = vst [vmem:[%s193 + $0x38] sm:$0xff] %v1369
        %s1378 = sand.u32 %s92, 1
        %s1379 = scalar_lea.sflag [#allocation4], %s1378
        %s1380 = sand.u32 %s92, 1
        %s1381 = smul.addr %s1380, 64
        %s1382 = scalar_lea.vmem [#allocation7], %s1381
        // Predicated region
        $region41: #{tpu_custom_call.1} parent=27 // pred_check
          %p1383 = pneg %p102
        $region42: #{tpu_custom_call.1} parent=27 // pred_check_branch
          %1385 = sbr.rel (%p1383) target = $region44
        $region43: #{tpu_custom_call.1} parent=27 // pred_region
          %s1386 = smul.u32 2, %s24
          %s1388 = ssub.s32 1024, 1024
          %1389 = vsyncadd %s1379, %s1388
          %s1390 = smul.addr %s1386, 128
          %s1391 = scalar_lea.hbm %s2, %s1390
          %s1392 = sshll.u32 %s1382, 4
          %s1393 = int_to_ptr.vmem [resolvable:$true] %s1392
          %1398 = dma.vmem_to_hbm [thread:$0]  %s1393, 1024, %s1391, %s1379, 256, 512, 16
        $region44: #{tpu_custom_call.1} parent=27 // pred_fallthru
          _
      $region28: #{tpu_custom_call.1} parent=5 // pred_fallthru
        _
      %p1399 = scmp.le.s32.totalorder 2, %s15
      // Predicated region
      $region45: #{tpu_custom_call.1} parent=5 // pred_check
        %p1400 = pneg %p1399
      $region46: #{tpu_custom_call.1} parent=5 // pred_check_branch
        %1402 = sbr.rel (%p1400) target = $region48
      $region47: #{tpu_custom_call.1} parent=5 // pred_region
        %s1403 = ssub.s32 %s15, 2
        // Predicated region
        $region49: #{tpu_custom_call.1} parent=47 // pred_check
          %p1404 = pneg %p108
        $region50: #{tpu_custom_call.1} parent=47 // pred_check_branch
          %1406 = sbr.rel (%p1404) target = $region52
        $region51: #{tpu_custom_call.1} parent=47 // pred_region
          %s1407 = sand.u32 %s93, 1
          %s1408 = scalar_lea.sflag [#allocation4], %s1407
          %s1409 = sand.u32 %s93, 1
          %s1410 = smul.addr %s1409, 64
          %s1411 = scalar_lea.vmem [#allocation7], %s1410
          %1412 = dma.done %s1408, 1024
        $region52: #{tpu_custom_call.1} parent=47 // pred_fallthru
          _
      $region48: #{tpu_custom_call.1} parent=5 // pred_fallthru
        _
    $region6: #{tpu_custom_call.1} parent=1 // loop_footer
      %s19 = sadd.s32 1, %s15
    $region7: #{tpu_custom_call.1} parent=1 // loop_footer_branch
      %14 = sbr.rel target = $region3
    $region8: #{tpu_custom_call.1} parent=1 // loop_exit
      _
    %1413 = vsyncpa [#allocation3], 1
    %s1414 = scalar_lea.sflag [#allocation3], 1
    %1415 = vsyncpa %s1414, 1
    %1416 = vsyncpa [#allocation6], 1
    %1417 = vsyncpa [#allocation4], 1
    %s1418 = scalar_lea.sflag [#allocation4], 1
    %1419 = vsyncpa %s1418, 1

</llo_original>
